<compile_context>
chip_gen: v7x
topology: tpu7x:2x2x1
jax: 0.10.0
libtpu: 0.0.40
codegen_flags: <defaults>
</compile_context>

<pallas_src>
import numpy as np
import jax
import jax.numpy as jnp
from jax.experimental import pallas as pl
from jax.experimental.pallas import tpu as pltpu

# ----------------------------- configuration --------------------------------
B = 2              # batch
SEQ_LEN = 16       # context_window
PRED_LEN = 8       # target_window
D_FEAT = 4         # d_feat == c_in == n_vars
C_IN = D_FEAT
D_MODEL = 32
PATCH_LEN = 4
STRIDE = 4
PATCH_NUM = (SEQ_LEN - PATCH_LEN) // STRIDE + 1 + 1   # +1 for padding_patch='end'
EPS = 1e-5                                            # RevIN eps


def _ceil_to(a, b):
    return (a + b - 1) // b * b


# Packed constant-buffer layout (rows x 256 lanes), all offsets static:
PND = PATCH_NUM * D_MODEL                      # 160
LANES = _ceil_to(PND, 128)                     # 256 (lane-dense, exact zero pad)
ROW_W1 = 0                                     # rows [0, L)          : W1_big (pad folded)
ROW_WC = _ceil_to(ROW_W1 + SEQ_LEN, 8)         # rows [16, 16+T)      : (W2-fused head weight)^T
ROW_BIAS = _ceil_to(ROW_WC + PRED_LEN, 8)      # row 24: b1 tiled; row 25: head bias (+b2 folded), bl
ROW_RC = _ceil_to(ROW_BIAS + 2, 8)             # rows [32, 32+V*B)    : per-row consts (aw, ab, wl, wl/(aw+eps^2))
CONST_ROWS = _ceil_to(ROW_RC + C_IN * B, 8)    # 40


# ------------------------------- Pallas kernel ------------------------------
def _pits_kernel(xs_ref, c_ref, o_ref):
    """Whole-batch PITS forward, single invocation (no grid).

    xs_ref : [V*B, L]   raw series, rows r = v*B + b
    c_ref  : [40, 256]  packed constants (see layout above)
    o_ref  : [B, T]
    """
    VB = xs_ref.shape[0]
    Bx = o_ref.shape[0]
    V = VB // Bx
    T = PRED_LEN

    xs = xs_ref[...]                                        # [VB, L]

    # ---- RevIN statistics (per (series, batch) row, reduction over time) ----
    mean = jnp.mean(xs, axis=1, keepdims=True)              # [VB, 1]
    var = jnp.mean((xs - mean) ** 2, axis=1, keepdims=True)
    rstd = jax.lax.rsqrt(var + EPS)                         # 1 / stdev
    stdev = (var + EPS) * rstd                              # = sqrt(var+EPS) (1 extra rounding; fine)

    aw = c_ref[ROW_RC:ROW_RC + VB, 0:1]                     # RevIN affine weight
    ab = c_ref[ROW_RC:ROW_RC + VB, 1:2]                     # RevIN affine bias
    wl_row = c_ref[ROW_RC:ROW_RC + VB, 2:3]                 # final Linear(d_feat,1) weight per row
    wl_raw = c_ref[ROW_RC:ROW_RC + VB, 3:4]                 # wl / (aw + eps^2)  (host precomputed)

    # fused norm:  xn = x * (aw*rstd) + (ab - mean*aw*rstd)
    scale = aw * rstd
    shift = ab - mean * scale
    xn = xs * scale + shift                                 # [VB, L]

    # ---- patch MLP layer 1: pad + unfold folded into block-diag W1 ----------
    w1 = c_ref[ROW_W1:ROW_W1 + SEQ_LEN, :]                  # [L, 256]
    b1 = c_ref[ROW_BIAS:ROW_BIAS + 1, :]                    # [1, 256]
    h = jnp.dot(xn, w1, preferred_element_type=jnp.float32) + b1
    h = jnp.maximum(h, 0.0)                                 # [VB, 256]  (cols >= PN*D are exactly 0)

    # ---- layer 2 + Flatten_Head fused into one dense dot (NT contraction) ---
    wcT = c_ref[ROW_WC:ROW_WC + T, :]                       # [T, 256]  == (W2-fused head weight)^T
    bias_eff = c_ref[ROW_BIAS + 1:ROW_BIAS + 2, 0:T]        # [1, T]    (bh + b2 folded through head)
    y = jax.lax.dot_general(h, wcT, (((1,), (1,)), ((), ())),
                            preferred_element_type=jnp.float32) + bias_eff   # [VB, T]

    # ---- RevIN denorm fused with the final Linear(d_feat,1) weight ----------
    # y_denorm = y * (stdev/(aw+eps^2)) + (mean - ab*stdev/(aw+eps^2)); then * wl
    scale3 = wl_raw * stdev
    shift3 = wl_row * mean - ab * scale3
    yw = y * scale3 + shift3                                # [VB, T]

    # ---- sum over the V series (contiguous [B, T] chunks: rows v*B + b) -----
    acc = yw[0:Bx, :]
    for v in range(1, V):                                   # static, V = 4
        acc = acc + yw[v * Bx:(v + 1) * Bx, :]

    bl = c_ref[ROW_BIAS + 1:ROW_BIAS + 2, T:T + 1]          # [1, 1]
    o_ref[...] = acc + bl                                   # [B, T]


# --------------------------- host-side weight packing ------------------------
def pack_params(params, batch):
    """Fold pad/unfold, W2, biases and the final linear into one [40, 256] buffer."""
    PN, PL, D, T, V, L, S = PATCH_NUM, PATCH_LEN, D_MODEL, PRED_LEN, C_IN, SEQ_LEN, STRIDE

    w1 = np.asarray(params["w1"], np.float32)               # [PL, D]  (= torch W1.T)
    b1 = np.asarray(params["b1"], np.float32)               # [D]
    w2 = np.asarray(params["w2"], np.float32)               # [D, D]   (= torch W2.T)
    b2 = np.asarray(params["b2"], np.float32)               # [D]
    wh_t = np.asarray(params["wh_torch"], np.float32)       # [T, D*PN] torch head layout
    bh = np.asarray(params["bh"], np.float32)               # [T]
    aw = np.asarray(params["aw"], np.float32)               # [V]
    ab = np.asarray(params["ab"], np.float32)               # [V]
    wl = np.asarray(params["wl"], np.float32).reshape(-1)   # [V]
    bl = float(np.asarray(params["bl"], np.float32)[0])

    const = np.zeros((CONST_ROWS, LANES), np.float32)

    # W1_big: block-diagonal over patches; replication-pad rows folded onto row L-1.
    for p in range(PN):
        for k in range(PL):
            src = min(p * S + k, L - 1)
            const[ROW_W1 + src, p * D:(p + 1) * D] += w1[k]

    # Head weight in (p*D + d, t) order, then fold W2 through it (no nonlinearity between).
    wh_flat = wh_t.reshape(T, D, PN).transpose(2, 1, 0).reshape(PN * D, T)   # [PN*D, T]
    wh_blocks = wh_flat.reshape(PN, D, T)
    wcomb = np.einsum("de,pet->pdt", w2, wh_blocks).reshape(PN * D, T)       # [PN*D, T]
    const[ROW_WC:ROW_WC + T, :PN * D] = wcomb.T                              # stored transposed

    # Biases: b1 tiled per patch; head bias with b2 folded through the head; bl scalar.
    const[ROW_BIAS, :PN * D] = np.tile(b1, PN)
    const[ROW_BIAS + 1, :T] = bh + b2 @ wh_blocks.sum(axis=0)
    const[ROW_BIAS + 1, T] = bl

    # Per-row constants, row r = v*batch + b.
    aw_r = np.repeat(aw, batch)
    ab_r = np.repeat(ab, batch)
    wl_r = np.repeat(wl, batch)
    const[ROW_RC:ROW_RC + V * batch, 0] = aw_r
    const[ROW_RC:ROW_RC + V * batch, 1] = ab_r
    const[ROW_RC:ROW_RC + V * batch, 2] = wl_r
    const[ROW_RC:ROW_RC + V * batch, 3] = wl_r / (aw_r + EPS * EPS)

    return jnp.asarray(const)


# --------------------------------- forward -----------------------------------
def pits_forward(x, const):
    """x: [B, seq_len, d_feat] float32  ->  [B, pred_len, 1] float32."""
    Bx, L, V = x.shape
    T = PRED_LEN

    # Only wrapper glue: series-major [V*B, L] layout (rows r = v*B + b).
    xs = jnp.transpose(x, (2, 0, 1)).reshape(V * Bx, L)

    out = pl.pallas_call(
        _pits_kernel,
        out_shape=jax.ShapeDtypeStruct((Bx, T), jnp.float32),
        in_specs=[
            pl.BlockSpec(memory_space=pltpu.MemorySpace.VMEM),   # xs
            pl.BlockSpec(memory_space=pltpu.MemorySpace.VMEM),   # packed constants
        ],
        out_specs=pl.BlockSpec(memory_space=pltpu.MemorySpace.VMEM),
    )(xs, const)

    return out.reshape(Bx, T, 1)


pits_forward_jit = jax.jit(pits_forward)


# ------------------------- numpy reference (torch semantics) ----------------
def reference_forward(x, params):
    x = np.asarray(x, np.float64)
    Bx, L, V = x.shape
    PN, PL, D, T, S = PATCH_NUM, PATCH_LEN, D_MODEL, PRED_LEN, STRIDE
    w1 = np.asarray(params["w1"], np.float64)
    b1 = np.asarray(params["b1"], np.float64)
    w2 = np.asarray(params["w2"], np.float64)
    b2 = np.asarray(params["b2"], np.float64)
    wh_t = np.asarray(params["wh_torch"], np.float64)
    bh = np.asarray(params["bh"], np.float64)
    aw = np.asarray(params["aw"], np.float64)
    ab = np.asarray(params["ab"], np.float64)
    wl = np.asarray(params["wl"], np.float64)
    bl = np.asarray(params["bl"], np.float64)

    z = np.transpose(x, (0, 2, 1))                        # [B, V, L]
    mean = z.mean(axis=2, keepdims=True)
    var = ((z - mean) ** 2).mean(axis=2, keepdims=True)
    stdev = np.sqrt(var + EPS)
    zn = (z - mean) / stdev * aw[None, :, None] + ab[None, :, None]
    zp = np.concatenate([zn, np.repeat(zn[:, :, -1:], S, axis=2)], axis=2)
    idx = np.arange(PN)[:, None] * S + np.arange(PL)[None, :]
    patches = zp[:, :, idx]                               # [B, V, PN, PL]
    h = np.maximum(patches @ w1 + b1, 0.0)
    zz = h @ w2 + b2                                      # [B, V, PN, D]
    zf = np.transpose(zz, (0, 1, 3, 2)).reshape(Bx, V, D * PN)
    y = zf @ wh_t.T + bh                                  # [B, V, T]
    y = (y - ab[None, :, None]) / (aw[None, :, None] + EPS * EPS)
    y = y * stdev + mean
    y = np.transpose(y, (0, 2, 1))                        # [B, T, V]
    out = y @ wl.T + bl
    return out.astype(np.float32)


# ----------------------------------- main ------------------------------------
if __name__ == "__main__":
    key = jax.random.PRNGKey(0)
    ks = jax.random.split(key, 11)

    PN, PL, D, T, V = PATCH_NUM, PATCH_LEN, D_MODEL, PRED_LEN, C_IN

    params = {
        "w1": 0.1 * jax.random.normal(ks[0], (PL, D), jnp.float32),       # Linear(patch_len, d_model).weight.T
        "b1": 0.1 * jax.random.normal(ks[1], (D,), jnp.float32),
        "w2": 0.1 * jax.random.normal(ks[2], (D, D), jnp.float32),        # Linear(d_model, d_model).weight.T
        "b2": 0.1 * jax.random.normal(ks[3], (D,), jnp.float32),
        "wh_torch": 0.1 * jax.random.normal(ks[4], (T, D * PN), jnp.float32),  # torch head weight
        "bh": 0.1 * jax.random.normal(ks[5], (T,), jnp.float32),
        "aw": 1.0 + 0.1 * jax.random.normal(ks[6], (V,), jnp.float32),    # RevIN affine_weight
        "ab": 0.1 * jax.random.normal(ks[7], (V,), jnp.float32),          # RevIN affine_bias
        "wl": 0.1 * jax.random.normal(ks[8], (1, V), jnp.float32),        # nn.Linear(d_feat, 1).weight
        "bl": 0.1 * jax.random.normal(ks[9], (1,), jnp.float32),
    }

    x = jax.random.normal(ks[10], (B, SEQ_LEN, D_FEAT), jnp.float32)

    const = pack_params(params, batch=B)                  # one-time host packing

    out = pits_forward_jit(x, const)
    out = jax.block_until_ready(out)
    assert out.shape == (B, PRED_LEN, 1), out.shape

    ref = reference_forward(np.asarray(x), params)
    np.testing.assert_allclose(np.asarray(out), ref, rtol=2e-3, atol=2e-3)

    print("KERNEL_OK")
</pallas_src>

<mosaic_0001>
module attributes {stable_mosaic.version = 11 : i64} {
  func.func @_pits_kernel(%arg0: memref<8x16xf32, #tpu.memory_space<vmem>>, %arg1: memref<40x256xf32, #tpu.memory_space<vmem>>, %arg2: memref<2x8xf32, #tpu.memory_space<vmem>>) attributes {dimension_semantics = [], scalar_prefetch = 0 : i64, scratch_operands = 0 : i64, tpu.core_type = #tpu.core_type<tc>} {
    %c0 = arith.constant 0 : index
    %c0_0 = arith.constant 0 : index
    %0 = vector.load %arg0[%c0, %c0_0] : memref<8x16xf32, #tpu.memory_space<vmem>>, vector<8x16xf32>
    %cst = arith.constant dense<0.000000e+00> : vector<8xf32>
    %1 = vector.multi_reduction <add>, %0, %cst [1] : vector<8x16xf32> to vector<8xf32>
    %2 = vector.shape_cast %1 : vector<8xf32> to vector<8x1xf32>
    %cst_1 = arith.constant 1.600000e+01 : f32
    %3 = vector.broadcast %cst_1 : f32 to vector<8x1xf32>
    %4 = arith.divf %2, %3 : vector<8x1xf32>
    %5 = vector.broadcast %4 : vector<8x1xf32> to vector<8x16xf32>
    %6 = arith.subf %0, %5 : vector<8x16xf32>
    %7 = arith.mulf %6, %6 : vector<8x16xf32>
    %cst_2 = arith.constant dense<0.000000e+00> : vector<8xf32>
    %8 = vector.multi_reduction <add>, %7, %cst_2 [1] : vector<8x16xf32> to vector<8xf32>
    %9 = vector.shape_cast %8 : vector<8xf32> to vector<8x1xf32>
    %cst_3 = arith.constant 1.600000e+01 : f32
    %10 = vector.broadcast %cst_3 : f32 to vector<8x1xf32>
    %11 = arith.divf %9, %10 : vector<8x1xf32>
    %cst_4 = arith.constant 9.99999974E-6 : f32
    %12 = vector.broadcast %cst_4 : f32 to vector<8x1xf32>
    %13 = arith.addf %11, %12 : vector<8x1xf32>
    %14 = math.rsqrt %13 : vector<8x1xf32>
    %cst_5 = arith.constant 9.99999974E-6 : f32
    %15 = vector.broadcast %cst_5 : f32 to vector<8x1xf32>
    %16 = arith.addf %11, %15 : vector<8x1xf32>
    %17 = arith.mulf %16, %14 : vector<8x1xf32>
    %c32 = arith.constant 32 : index
    %c0_6 = arith.constant 0 : index
    %18 = vector.load %arg1[%c32, %c0_6] : memref<40x256xf32, #tpu.memory_space<vmem>>, vector<8x1xf32>
    %c32_7 = arith.constant 32 : index
    %c1 = arith.constant 1 : index
    %19 = vector.load %arg1[%c32_7, %c1] : memref<40x256xf32, #tpu.memory_space<vmem>>, vector<8x1xf32>
    %c32_8 = arith.constant 32 : index
    %c2 = arith.constant 2 : index
    %20 = vector.load %arg1[%c32_8, %c2] : memref<40x256xf32, #tpu.memory_space<vmem>>, vector<8x1xf32>
    %c32_9 = arith.constant 32 : index
    %c3 = arith.constant 3 : index
    %21 = vector.load %arg1[%c32_9, %c3] : memref<40x256xf32, #tpu.memory_space<vmem>>, vector<8x1xf32>
    %22 = arith.mulf %18, %14 : vector<8x1xf32>
    %23 = arith.mulf %4, %22 : vector<8x1xf32>
    %24 = arith.subf %19, %23 : vector<8x1xf32>
    %25 = vector.broadcast %22 : vector<8x1xf32> to vector<8x16xf32>
    %26 = arith.mulf %0, %25 : vector<8x16xf32>
    %27 = vector.broadcast %24 : vector<8x1xf32> to vector<8x16xf32>
    %28 = arith.addf %26, %27 : vector<8x16xf32>
    %c0_10 = arith.constant 0 : index
    %c0_11 = arith.constant 0 : index
    %29 = vector.load %arg1[%c0_10, %c0_11] : memref<40x256xf32, #tpu.memory_space<vmem>>, vector<16x256xf32>
    %c24 = arith.constant 24 : index
    %c0_12 = arith.constant 0 : index
    %30 = vector.load %arg1[%c24, %c0_12] : memref<40x256xf32, #tpu.memory_space<vmem>>, vector<1x256xf32>
    %cst_13 = arith.constant dense<0.000000e+00> : vector<8x256xf32>
    %31 = tpu.matmul %28, %29, %cst_13 {dimension_numbers = #tpu.dot_dimension_numbers<[1], [0], [0], [1], [0, 0, 1, 1], [], []>} : vector<8x16xf32>, vector<16x256xf32>, vector<8x256xf32> -> vector<8x256xf32>
    %32 = vector.broadcast %30 : vector<1x256xf32> to vector<8x256xf32>
    %33 = arith.addf %31, %32 : vector<8x256xf32>
    %cst_14 = arith.constant 0.000000e+00 : f32
    %34 = vector.broadcast %cst_14 : f32 to vector<8x256xf32>
    %35 = arith.maximumf %33, %34 : vector<8x256xf32>
    %c16 = arith.constant 16 : index
    %c0_15 = arith.constant 0 : index
    %36 = vector.load %arg1[%c16, %c0_15] : memref<40x256xf32, #tpu.memory_space<vmem>>, vector<8x256xf32>
    %c25 = arith.constant 25 : index
    %c0_16 = arith.constant 0 : index
    %37 = vector.load %arg1[%c25, %c0_16] : memref<40x256xf32, #tpu.memory_space<vmem>>, vector<1x8xf32>
    %cst_17 = arith.constant dense<0.000000e+00> : vector<8x8xf32>
    %38 = tpu.matmul %35, %36, %cst_17 {dimension_numbers = #tpu.dot_dimension_numbers<[1], [1], [0], [0], [0, 0, 1, 0], [], []>} : vector<8x256xf32>, vector<8x256xf32>, vector<8x8xf32> -> vector<8x8xf32>
    %39 = vector.broadcast %37 : vector<1x8xf32> to vector<8x8xf32>
    %40 = arith.addf %38, %39 : vector<8x8xf32>
    %41 = arith.mulf %21, %17 : vector<8x1xf32>
    %42 = arith.mulf %20, %4 : vector<8x1xf32>
    %43 = arith.mulf %19, %41 : vector<8x1xf32>
    %44 = arith.subf %42, %43 : vector<8x1xf32>
    %45 = vector.broadcast %41 : vector<8x1xf32> to vector<8x8xf32>
    %46 = arith.mulf %40, %45 : vector<8x8xf32>
    %47 = vector.broadcast %44 : vector<8x1xf32> to vector<8x8xf32>
    %48 = arith.addf %46, %47 : vector<8x8xf32>
    %49 = vector.extract_strided_slice %48 {offsets = [0, 0], sizes = [2, 8], strides = [1, 1]} : vector<8x8xf32> to vector<2x8xf32>
    %50 = vector.extract_strided_slice %48 {offsets = [2, 0], sizes = [2, 8], strides = [1, 1]} : vector<8x8xf32> to vector<2x8xf32>
    %51 = arith.addf %49, %50 : vector<2x8xf32>
    %52 = vector.extract_strided_slice %48 {offsets = [4, 0], sizes = [2, 8], strides = [1, 1]} : vector<8x8xf32> to vector<2x8xf32>
    %53 = arith.addf %51, %52 : vector<2x8xf32>
    %54 = vector.extract_strided_slice %48 {offsets = [6, 0], sizes = [2, 8], strides = [1, 1]} : vector<8x8xf32> to vector<2x8xf32>
    %55 = arith.addf %53, %54 : vector<2x8xf32>
    %c25_18 = arith.constant 25 : index
    %c8 = arith.constant 8 : index
    %56 = vector.load %arg1[%c25_18, %c8] : memref<40x256xf32, #tpu.memory_space<vmem>>, vector<1x1xf32>
    %57 = vector.broadcast %56 : vector<1x1xf32> to vector<2x8xf32>
    %58 = arith.addf %55, %57 : vector<2x8xf32>
    %c0_19 = arith.constant 0 : index
    %c0_20 = arith.constant 0 : index
    %59 = vector.load %arg2[%c0_19, %c0_20] : memref<2x8xf32, #tpu.memory_space<vmem>>, vector<2x8xf32>
    tpu.vector_store %arg2[%c0_19, %c0_20], %58 {strides = array<i32>} : memref<2x8xf32, #tpu.memory_space<vmem>>, vector<2x8xf32>,
    return
  }
}

</mosaic_0001>

<llo_original>
// kernel: pits_forward.1
$region0: #{pits_forward.1}
  #allocation0 [shape = 'u32[]', space=smem, size = 0x4, offset = 0x4, fixed_abs, tag = 'smem constant byte address 0x4 - core index']
  #allocation1 [shape = 'u32[144,128]{1,0:T(1,128)}', space=vmem, size = 0x12000, scoped, tag = 'internal scratch']
  %s0 = inlined_call_operand.vmem [shape: f32[8,16], index: 0, kind: input, shape index: {}]
  %s1 = inlined_call_operand.hbm [shape: f32[40,256], index: 1, kind: input, shape index: {}]
  %s2 = inlined_call_operand.hbm [shape: f32[2,8], index: 2, kind: output, shape index: {}]
  %s3 = sld [smem:[#allocation0]]
  $region22: #{pits_forward.1} parent=0
    _
  %s5 = ssub.s32 1, %s3
  %s6 = scalar_select 0, %s5, %s3
  $region1: #{pits_forward.1} parent=0
    #allocation2 [shape = 'u8[40960]{0}', space=vmem, size = 0xa000, scoped, tag = 'input window, operand 1, single buffered']
    #allocation3 [shape = 's32[1]{0}', space=sflag, size = 0x4, scoped, tag = 'scoped memory for pits_forward.1']
    #allocation4 [shape = 's32[1]{0}', space=sflag, size = 0x4, scoped, tag = 'scoped memory for pits_forward.1']
    #allocation5 [shape = 'u8[1024]{0}', space=vmem, size = 0x400, scoped, tag = 'output window, operand 0, single buffered']
    %7 = vsyncpa [#allocation3], 0
    %8 = vsyncpa [#allocation4], 0
    // Predicated region
    $region2: #{pits_forward.1} parent=1 // pred_check
      _
    $region3: #{pits_forward.1} parent=1 // pred_check_branch
      %10 = sbr.rel (0) target = $region5
    $region4: #{pits_forward.1} parent=1 // pred_region
      _
    $region5: #{pits_forward.1} parent=1 // pred_fallthru
      _
    // Predicated region
    $region6: #{pits_forward.1} parent=1 // pred_check
      _
    $region7: #{pits_forward.1} parent=1 // pred_check_branch
      %12 = sbr.rel (0) target = $region9
    $region8: #{pits_forward.1} parent=1 // pred_region
      %s14 = ssub.s32 1280, 1280
      %15 = vsyncadd [#allocation3], %s14
      %s16 = sshll.u32 [#allocation2], 4
      %s17 = int_to_ptr.vmem [resolvable:$true] %s16
      %22 = dma.hbm_to_vmem [thread:$0]  %s1, 1280, %s17, [#allocation3], 256, 256, 16
    $region9: #{pits_forward.1} parent=1 // pred_fallthru
      _
    // Predicated region
    $region10: #{pits_forward.1} parent=1 // pred_check
      _
    $region11: #{pits_forward.1} parent=1 // pred_check_branch
      %24 = sbr.rel (0) target = $region13
    $region12: #{pits_forward.1} parent=1 // pred_region
      %25 = dma.done [#allocation3], 1280
    $region13: #{pits_forward.1} parent=1 // pred_fallthru
      _
    %v26 = vld [vmem:[%s0] sm:$0xff]
    %vm27 = vcmask 130048
    %v28 = vsel %vm27, %v26, 0.0
    %29 = vadd.xlane.f32.xlu0 %v28
    %v30 = vpop.xlane.xlu0 %29
    %v31 = vrcp.pop 16.0
    %v32 = vmul.f32 %v30, %v31
    %v33 = vsub.f32 %v26, %v32
    %v34 = vmul.f32 %v33, %v33
    %v35 = vsel %vm27, %v34, 0.0
    %36 = vadd.xlane.f32.xlu0 %v35
    %v37 = vpop.xlane.xlu0 %36
    %v38 = vmul.f32 %v37, %v31
    %v39 = vadd.f32 %v38, 1e-05
    %v40 = vrsqrt.pop %v39
    %v41 = vmul.f32 %v39, %v40
    %v42 = vld [vmem:[#allocation2 + $0x40] sm:$0xff]
    %v43 = vmul.f32 %v42, %v40
    %v44 = vmul.f32 %v32, %v43
    %46 = vrot.lane.b32.xlu0 %v44, 1
    %v47 = vpop.permute.xlu0 %46
    %v49 = vsub.f32 %v42, %v47
    %51 = vset.pattern.permute.xlu0 0
    %52 = vperm.xlu0 %51, %v43
    %v53 = vpop.permute.xlu0 %52
    %v55 = vmul.f32 %v26, %v53
    %57 = vset.pattern.permute.xlu0 1
    %58 = vperm.xlu0 %57, %v49
    %v59 = vpop.permute.xlu0 %58
    %v61 = vadd.f32 %v55, %v59
    %v62 = vld [vmem:[#allocation2] sm:$0xff]
    %v63 = vld [vmem:[#allocation2 + $0x8] sm:$0xff]
    %v64 = vld [vmem:[#allocation2 + $0x10] sm:$0xff]
    %v65 = vld [vmem:[#allocation2 + $0x18] sm:$0xff]
    %s66 = scalar_lea.vmem [#allocation2], 48
    %v67 = vld [vmem:[%s66] ss:$8 sm:$0x3]
    %v69 = vlaneseq
    %v70 = vshrl.u32 %v69, 7
    %v71 = vsub.s32 0, %v70
    %v72 = vrot.slane %v67, %v71
    %v73 = vlaneseq
    %v74 = vshrl.u32 %v73, 7
    %v75 = vsub.s32 1, %v74
    %v76 = vrot.slane %v67, %v75
    %v80 = vsel %vm27, %v61, 0
    %82 = vmatprep.subr.mxu0 %v63
    %83 = vmatpush1.msra.mxu0 %v62
    %84 = vmatprep.subr.mxu0 %v65
    %85 = vmatpush1.msra.mxu0 %v64
    %86 = vmatprep.subr.mxu0 0.0
    %87 = vmatpush1.msra.mxu0 0.0
    %88 = vmatprep.subr.mxu0 0.0
    %89 = vmatpush1.msra.mxu0 0.0
    %90 = vmatprep.subr.mxu0 0.0
    %91 = vmatpush1.msra.mxu0 0.0
    %92 = vmatprep.subr.mxu0 0.0
    %93 = vmatpush1.msra.mxu0 0.0
    %94 = vmatprep.subr.mxu0 0.0
    %95 = vmatpush1.msra.mxu0 0.0
    %96 = vmatprep.subr.mxu0 0.0
    %97 = vmatpush1.msra.mxu0 0.0
    %98 = vmatprep.subr.mxu0 0.0
    %99 = vmatpush1.msra.mxu0 0.0
    %100 = vmatprep.subr.mxu0 0.0
    %101 = vmatpush1.msra.mxu0 0.0
    %102 = vmatprep.subr.mxu0 0.0
    %103 = vmatpush1.msra.mxu0 0.0
    %104 = vmatprep.subr.mxu0 0.0
    %105 = vmatpush1.msra.mxu0 0.0
    %106 = vmatprep.subr.mxu0 0.0
    %107 = vmatpush1.msra.mxu0 0.0
    %108 = vmatprep.subr.mxu0 0.0
    %109 = vmatpush1.msra.mxu0 0.0
    %110 = vmatprep.subr.mxu0 0.0
    %111 = vmatpush1.msra.mxu0 0.0
    %112 = vmatprep.subr.mxu0 0.0
    %113 = vmatpush1.msra.mxu0 0.0
    %114 = vmatprep.subr.mxu0 0.0
    %115 = vmatpush1.msra.mxu0 0.0
    %116 = vmatprep.subr.mxu0 0.0
    %117 = vmatpush1.msra.mxu0 0.0
    %118 = vmatprep.subr.mxu0 0.0
    %119 = vmatpush1.msra.mxu0 0.0
    %120 = vmatprep.subr.mxu0 0.0
    %121 = vmatpush1.msra.mxu0 0.0
    %122 = vmatprep.subr.mxu0 0.0
    %123 = vmatpush1.msra.mxu0 0.0
    %124 = vmatprep.subr.mxu0 0.0
    %125 = vmatpush1.msra.mxu0 0.0
    %126 = vmatprep.subr.mxu0 0.0
    %127 = vmatpush1.msra.mxu0 0.0
    %128 = vmatprep.subr.mxu0 0.0
    %129 = vmatpush1.msra.mxu0 0.0
    %130 = vmatprep.subr.mxu0 0.0
    %131 = vmatpush1.msra.mxu0 0.0
    %132 = vmatprep.subr.mxu0 0.0
    %133 = vmatpush1.msra.mxu0 0.0
    %134 = vmatprep.subr.mxu0 0.0
    %135 = vmatpush1.msra.mxu0 0.0
    %136 = vmatprep.subr.mxu0 0.0
    %137 = vmatpush1.msra.mxu0 0.0
    %138 = vmatprep.subr.mxu0 0.0
    %139 = vmatpush1.msra.mxu0 0.0
    %140 = vmatprep.subr.mxu0 0.0
    %141 = vmatpush1.msra.mxu0 0.0
    %142 = vmatprep.subr.mxu0 0.0
    %143 = vmatpush1.msra.mxu0 0.0
    %144 = vmatprep.subr.mxu0 0.0
    %145 = vmatpush1.msra.mxu0 0.0
    %146 = vmatprep.mubr.f32.mxu0 0.0
    %147 = vmatmul.mubr.f32.gmra.mrb[0].mxu0 %v80
    %v148 = vpop.f32.mrb[0].mxu0
    %v149 = vadd.f32 %v72, %v148
    %v150 = vpop.f32.mrb[0].mxu0
    %v151 = vadd.f32 %v76, %v150
    %152 = vdwg.mxu0
    %v153 = vmax.f32 %v149, 0.0
    %v154 = vmax.f32 %v151, 0.0
    %v155 = vld [vmem:[#allocation2 + $0x20] sm:$0xff]
    %v156 = vld [vmem:[#allocation2 + $0x28] sm:$0xff]
    %v157 = vld [vmem:[#allocation2 + $0x31] ss:$0 sm:$0xff]
    %158 = vmatprep.subr.mxu0 %v156
    %159 = vmatpush1.xpose.msra.mxu0 %v155
    %160 = vmatprep.subr.mxu0 0.0
    %161 = vmatpush1.xpose.msra.mxu0 0.0
    %162 = vmatprep.subr.mxu0 0.0
    %163 = vmatpush1.xpose.msra.mxu0 0.0
    %164 = vmatprep.subr.mxu0 0.0
    %165 = vmatpush1.xpose.msra.mxu0 0.0
    %166 = vmatprep.subr.mxu0 0.0
    %167 = vmatpush1.xpose.msra.mxu0 0.0
    %168 = vmatprep.subr.mxu0 0.0
    %169 = vmatpush1.xpose.msra.mxu0 0.0
    %170 = vmatprep.subr.mxu0 0.0
    %171 = vmatpush1.xpose.msra.mxu0 0.0
    %172 = vmatprep.subr.mxu0 0.0
    %173 = vmatpush1.xpose.msra.mxu0 0.0
    %174 = vmatprep.subr.mxu0 0.0
    %175 = vmatpush1.xpose.msra.mxu0 0.0
    %176 = vmatprep.subr.mxu0 0.0
    %177 = vmatpush1.xpose.msra.mxu0 0.0
    %178 = vmatprep.subr.mxu0 0.0
    %179 = vmatpush1.xpose.msra.mxu0 0.0
    %180 = vmatprep.subr.mxu0 0.0
    %181 = vmatpush1.xpose.msra.mxu0 0.0
    %182 = vmatprep.subr.mxu0 0.0
    %183 = vmatpush1.xpose.msra.mxu0 0.0
    %184 = vmatprep.subr.mxu0 0.0
    %185 = vmatpush1.xpose.msra.mxu0 0.0
    %186 = vmatprep.subr.mxu0 0.0
    %187 = vmatpush1.xpose.msra.mxu0 0.0
    %188 = vmatprep.subr.mxu0 0.0
    %189 = vmatpush1.xpose.msra.mxu0 0.0
    %190 = vmatprep.subr.mxu0 0.0
    %191 = vmatpush1.xpose.msra.mxu0 0.0
    %192 = vmatprep.subr.mxu0 0.0
    %193 = vmatpush1.xpose.msra.mxu0 0.0
    %194 = vmatprep.subr.mxu0 0.0
    %195 = vmatpush1.xpose.msra.mxu0 0.0
    %196 = vmatprep.subr.mxu0 0.0
    %197 = vmatpush1.xpose.msra.mxu0 0.0
    %198 = vmatprep.subr.mxu0 0.0
    %199 = vmatpush1.xpose.msra.mxu0 0.0
    %200 = vmatprep.subr.mxu0 0.0
    %201 = vmatpush1.xpose.msra.mxu0 0.0
    %202 = vmatprep.subr.mxu0 0.0
    %203 = vmatpush1.xpose.msra.mxu0 0.0
    %204 = vmatprep.subr.mxu0 0.0
    %205 = vmatpush1.xpose.msra.mxu0 0.0
    %206 = vmatprep.subr.mxu0 0.0
    %207 = vmatpush1.xpose.msra.mxu0 0.0
    %208 = vmatprep.subr.mxu0 0.0
    %209 = vmatpush1.xpose.msra.mxu0 0.0
    %210 = vmatprep.subr.mxu0 0.0
    %211 = vmatpush1.xpose.msra.mxu0 0.0
    %212 = vmatprep.subr.mxu0 0.0
    %213 = vmatpush1.xpose.msra.mxu0 0.0
    %214 = vmatprep.subr.mxu0 0.0
    %215 = vmatpush1.xpose.msra.mxu0 0.0
    %216 = vmatprep.subr.mxu0 0.0
    %217 = vmatpush1.xpose.msra.mxu0 0.0
    %218 = vmatprep.subr.mxu0 0.0
    %219 = vmatpush1.xpose.msra.mxu0 0.0
    %220 = vmatprep.subr.mxu0 0.0
    %221 = vmatpush1.xpose.msra.mxu0 0.0
    %222 = vmatprep.mubr.f32.mxu0 %v154
    %223 = vmatmul.mubr.f32.gmra.mrb[0].mxu0 %v153
    %v224 = vpop.f32.mrb[0].mxu0
    %v225 = vadd.f32 %v157, %v224
    %v226 = vpop.f32.mrb[0].mxu0
    %227 = vdwg.mxu0
    %v228 = vmul.f32 %v42, %v41
    %v229 = vmul.f32 %v42, %v32
    %231 = vrot.lane.b32.xlu0 %v228, 126
    %v232 = vpop.permute.xlu0 %231
    %v234 = vmul.f32 %v42, %v232
    %236 = vrot.lane.b32.xlu0 %v234, 1
    %v237 = vpop.permute.xlu0 %236
    %v239 = vsub.f32 %v229, %v237
    %240 = vset.pattern.permute.xlu0 3
    %241 = vperm.xlu0 %240, %v228
    %v242 = vpop.permute.xlu0 %241
    %v244 = vmul.f32 %v225, %v242
    %246 = vset.pattern.permute.xlu0 2
    %247 = vperm.xlu0 %246, %v239
    %v248 = vpop.permute.xlu0 %247
    %v250 = vadd.f32 %v244, %v248
    %v252 = vrot.slane %v250, 2
    %v254 = vadd.f32 %v250, %v252
    %v255 = vrot.slane %v250, 4
    %v257 = vadd.f32 %v254, %v255
    %v258 = vrot.slane %v250, 6
    %v260 = vadd.f32 %v257, %v258
    %262 = vset.pattern.permute.xlu0 8
    %263 = vperm.xlu0 %262, %v157
    %v264 = vpop.permute.xlu0 %263
    %v266 = vadd.f32 %v260, %v264
    %vm267 = vcmask 58368
    %268 = vst.msk [vmem:[#allocation5] sm:$0x3] %vm267, %v266
    // Predicated region
    $region14: #{pits_forward.1} parent=1 // pred_check
      _
    $region15: #{pits_forward.1} parent=1 // pred_check_branch
      %270 = sbr.rel (0) target = $region17
    $region16: #{pits_forward.1} parent=1 // pred_region
      %s272 = ssub.s32 32, 32
      %273 = vsyncadd [#allocation4], %s272
      %s275 = sshll.u32 [#allocation5], 4
      %s276 = int_to_ptr.vmem [resolvable:$true] %s275
      %278 = dma.vmem_to_hbm [thread:$0]  %s276, 32, %s2, [#allocation4]
    $region17: #{pits_forward.1} parent=1 // pred_fallthru
      _
    // Predicated region
    $region18: #{pits_forward.1} parent=1 // pred_check
      _
    $region19: #{pits_forward.1} parent=1 // pred_check_branch
      %280 = sbr.rel (0) target = $region21
    $region20: #{pits_forward.1} parent=1 // pred_region
      %281 = dma.done [#allocation4], 32
    $region21: #{pits_forward.1} parent=1 // pred_fallthru
      _
    %282 = vsyncpa [#allocation3], 1
    %283 = vsyncpa [#allocation4], 1

</llo_original>
